<compile_context>
chip_gen: v7x
topology: tpu7x:2x2x1
jax: 0.10.0
libtpu: 0.0.40
codegen_flags: <defaults>
</compile_context>

<pallas_src>
import jax
import jax.numpy as jnp
from jax.experimental import pallas as pl
from jax.experimental.pallas import tpu as pltpu


def _rotary_kernel(a_ref, b_ref, pos_ref, out_ref):
    """out[r, c] = A[c] + pos[r] * B[c]  (affine in the row position)."""
    out_ref[...] = a_ref[...] + pos_ref[...] * b_ref[...]


def make_inv_freq(dim: int, omega: float = 10000.0) -> jnp.ndarray:
    # Matches: 1.0 / omega ** (torch.arange(0, dim, 4).float() / dim)
    idx = jnp.arange(0, dim, 4, dtype=jnp.float32)
    return 1.0 / (omega ** (idx / dim))


def _round_up(x: int, m: int) -> int:
    return -(-x // m) * m


def _choose_tiles(hw: int, lanes: int, target_bytes: int) -> tuple:
    """Pick (row_tile, lane_tile) for the (hw, lanes) f32 output slab."""
    row_bytes = lanes * 4
    if 8 * row_bytes > target_bytes:
        # Even an 8-row stripe blows the tile budget (huge HW*d): tile the lane
        # axis too, keeping full-width 128-lane stores.
        tj_budget = max(128, (target_bytes // (8 * 4)) // 128 * 128)
        return 8, min(tj_budget, _round_up(lanes, 128))
    # Full lane width per row. Row tile from the byte budget ...
    ti_budget = max(8, (target_bytes // row_bytes) // 8 * 8)
    # ... but keep >=2 row tiles (>=4 for larger HW) so v7x megacore gets both
    # TensorCores and the pipeline overlaps compute with writeback.
    if hw <= 8:
        min_tiles = 1
    elif hw < 32:
        min_tiles = 2
    else:
        min_tiles = 4
    ti_balance = _round_up(-(-hw // min_tiles), 8)
    return max(8, min(ti_budget, ti_balance)), lanes


def rotary_embedding(inv_freq, height_width, *, tile_rows=None, tile_lanes=None,
                     target_tile_bytes=8 << 20, min_pallas_bytes=2 << 20):
    """JAX/Pallas equivalent of RotaryEmbedding.forward(height_width)."""
    hw = int(height_width)
    f_len = int(inv_freq.shape[0])
    d = 4 * f_len
    n = hw * hw
    lanes = hw * d            # lane width of the dense (hw, hw*d) output slab

    # --- tiny per-lane constants (parameter glue, O(HW*d) vs O(HW^2*d) table) ---
    rep = jnp.repeat(inv_freq.astype(jnp.float32), 2, axis=-1)      # (2F,) f0 f0 f1 f1 ...
    zeros = jnp.zeros_like(rep)
    a_base = jnp.concatenate([rep, zeros])                          # (d,) scaled by j
    b_base = jnp.concatenate([zeros, rep])                          # (d,) scaled by i
    j_pos = jnp.arange(hw, dtype=jnp.float32)
    a_vec = (j_pos[:, None] * a_base[None, :]).reshape(1, lanes)    # (1, HW*d)
    b_vec = jnp.broadcast_to(b_base[None, :], (hw, d)).reshape(1, lanes)
    pos = jnp.arange(hw, dtype=jnp.float32).reshape(hw, 1)          # (HW, 1)

    # --- tiny-table fast path: a pallas_call would be pure launch overhead ------
    if n * d * 4 < min_pallas_bytes and tile_rows is None and tile_lanes is None:
        return (a_vec + pos * b_vec).reshape(n, d)

    # --- tiling ------------------------------------------------------------------
    auto_ti, auto_tj = _choose_tiles(hw, lanes, target_tile_bytes)
    ti = int(tile_rows) if tile_rows is not None else auto_ti
    tj = int(tile_lanes) if tile_lanes is not None else auto_tj
    assert ti % 8 == 0 or ti == hw, "tile_rows must be a multiple of 8 (or HW)"
    assert tj % 128 == 0 or tj == lanes, "tile_lanes must be a multiple of 128 (or HW*dim)"

    grid = (pl.cdiv(hw, ti), pl.cdiv(lanes, tj))

    # VMEM: 2 double-buffered output tiles + double-buffered A/B/pos blocks + margin.
    tile_bytes = ti * tj * 4
    const_bytes = 2 * (2 * tj * 4) + 2 * max(ti, 8) * 128 * 4
    vmem_limit = int(min(48 << 20, max(4 << 20, 2 * tile_bytes + const_bytes + (1 << 20))))

    out2d = pl.pallas_call(
        _rotary_kernel,
        out_shape=jax.ShapeDtypeStruct((hw, lanes), jnp.float32),
        grid=grid,
        in_specs=[pl.BlockSpec((1, tj), lambda i, j: (0, j)),    # A: per-lane constant
                  pl.BlockSpec((1, tj), lambda i, j: (0, j)),    # B: per-lane constant
                  pl.BlockSpec((ti, 1), lambda i, j: (i, 0))],   # pos: per-row scalar
        out_specs=pl.BlockSpec((ti, tj), lambda i, j: (i, j)),
        compiler_params=pltpu.CompilerParams(
            dimension_semantics=("parallel", "parallel"),        # megacore on v7x
            vmem_limit_bytes=vmem_limit),
        cost_estimate=pl.CostEstimate(
            flops=2 * n * d, transcendentals=0,
            bytes_accessed=n * d * 4 + 2 * lanes * 4 + hw * 4),
    )(a_vec, b_vec, pos)

    # Free reshape (row-major contiguous): (HW, HW*d) -> (HW*HW, d).
    return out2d.reshape(n, d)


def _reference(inv_freq, height_width):
    """Pure-JAX reference mirroring the PyTorch forward."""
    pos = jnp.arange(height_width, dtype=jnp.float32)
    freqs = jnp.einsum("i,j->ij", pos, inv_freq)                    # (HW, F)
    freqs = jnp.repeat(freqs, 2, axis=-1)                           # (HW, 2F)
    a = jnp.broadcast_to(freqs[None, :, :], (height_width, height_width, freqs.shape[-1]))
    b = jnp.broadcast_to(freqs[:, None, :], (height_width, height_width, freqs.shape[-1]))
    out = jnp.concatenate([a, b], axis=-1)                          # (HW, HW, 4F)
    return out.reshape(height_width * height_width, -1)


if __name__ == "__main__":
    _ = jax.random.PRNGKey(0)  # module is deterministic (arange-derived buffer); no random inputs
    dim = 32
    height_width = 16

    inv_freq = make_inv_freq(dim)                                   # (8,)
    ref = _reference(inv_freq, height_width)

    # Pallas path, auto-chosen tiles (forced past the small-size JAX bypass).
    out = jax.block_until_ready(rotary_embedding(inv_freq, height_width, min_pallas_bytes=0))
    assert out.shape == (height_width * height_width, dim), out.shape
    assert jnp.allclose(out, ref, atol=1e-6, rtol=1e-6)

    # Single row tile (exercises grid=(1,1) path).
    out_one = jax.block_until_ready(rotary_embedding(inv_freq, height_width, tile_rows=16))
    assert jnp.allclose(out_one, ref, atol=1e-6, rtol=1e-6)

    # Lane-tiled path (2D grid, 128-lane blocks).
    out_lt = jax.block_until_ready(rotary_embedding(inv_freq, height_width, tile_lanes=128))
    assert jnp.allclose(out_lt, ref, atol=1e-6, rtol=1e-6)

    # Non-multiple-of-8 spatial extent -> cdiv grid with a masked last block.
    hw7 = 7
    out7 = jax.block_until_ready(rotary_embedding(inv_freq, hw7, min_pallas_bytes=0))
    assert jnp.allclose(out7, _reference(inv_freq, hw7), atol=1e-6, rtol=1e-6)

    # Default small-table fast path agrees too.
    out_small = jax.block_until_ready(rotary_embedding(inv_freq, height_width))
    assert jnp.allclose(out_small, ref, atol=1e-6, rtol=1e-6)

    print("KERNEL_OK")
</pallas_src>

<mosaic_0001>
module attributes {stable_mosaic.version = 11 : i64} {
  func.func @_rotary_kernel(%arg0: i32, %arg1: i32, %arg2: memref<1x512xf32, #tpu.memory_space<vmem>>, %arg3: memref<1x512xf32, #tpu.memory_space<vmem>>, %arg4: memref<8x1xf32, #tpu.memory_space<vmem>>, %arg5: memref<8x512xf32, #tpu.memory_space<vmem>>) attributes {dimension_semantics = [#tpu.dimension_semantics<parallel>, #tpu.dimension_semantics<parallel>], iteration_bounds = array<i64: 2, 1>, scalar_prefetch = 0 : i64, scratch_operands = 0 : i64, tpu.core_type = #tpu.core_type<tc>, window_params = [{transform_indices = @transform_0, window_bounds = array<i64: 1, 512>}, {transform_indices = @transform_1, window_bounds = array<i64: 1, 512>}, {transform_indices = @transform_2, window_bounds = array<i64: 8, 1>}, {transform_indices = @transform_3, window_bounds = array<i64: 8, 512>}]} {
    %c0 = arith.constant 0 : index
    %c0_0 = arith.constant 0 : index
    %0 = vector.load %arg2[%c0, %c0_0] : memref<1x512xf32, #tpu.memory_space<vmem>>, vector<1x512xf32>
    %c0_1 = arith.constant 0 : index
    %c0_2 = arith.constant 0 : index
    %1 = vector.load %arg4[%c0_1, %c0_2] : memref<8x1xf32, #tpu.memory_space<vmem>>, vector<8x1xf32>
    %c0_3 = arith.constant 0 : index
    %c0_4 = arith.constant 0 : index
    %2 = vector.load %arg3[%c0_3, %c0_4] : memref<1x512xf32, #tpu.memory_space<vmem>>, vector<1x512xf32>
    %3 = vector.broadcast %1 : vector<8x1xf32> to vector<8x512xf32>
    %4 = vector.broadcast %2 : vector<1x512xf32> to vector<8x512xf32>
    %5 = arith.mulf %3, %4 : vector<8x512xf32>
    %6 = vector.broadcast %0 : vector<1x512xf32> to vector<8x512xf32>
    %7 = arith.addf %6, %5 : vector<8x512xf32>
    %c0_5 = arith.constant 0 : index
    %c0_6 = arith.constant 0 : index
    %8 = vector.load %arg5[%c0_5, %c0_6] : memref<8x512xf32, #tpu.memory_space<vmem>>, vector<8x512xf32>
    tpu.vector_store %arg5[%c0_5, %c0_6], %7 {strides = array<i32>} : memref<8x512xf32, #tpu.memory_space<vmem>>, vector<8x512xf32>,
    return
  }
  func.func @transform_0(%arg0: i32, %arg1: i32) -> (i32, i32) {
    %c0_i32 = arith.constant 0 : i32
    %c0_i32_0 = arith.constant 0 : i32
    return %c0_i32, %arg1 : i32, i32
  }
  func.func @transform_1(%arg0: i32, %arg1: i32) -> (i32, i32) {
    %c0_i32 = arith.constant 0 : i32
    %c0_i32_0 = arith.constant 0 : i32
    return %c0_i32, %arg1 : i32, i32
  }
  func.func @transform_2(%arg0: i32, %arg1: i32) -> (i32, i32) {
    %c0_i32 = arith.constant 0 : i32
    %c0_i32_0 = arith.constant 0 : i32
    return %arg0, %c0_i32 : i32, i32
  }
  func.func @transform_3(%arg0: i32, %arg1: i32) -> (i32, i32) {
    %c0_i32 = arith.constant 0 : i32
    return %arg0, %arg1 : i32, i32
  }
}

</mosaic_0001>

<llo_original>
// kernel: tpu_custom_call.1
$region0: #{tpu_custom_call.1}
  #allocation0 [shape = 'u32[]', space=smem, size = 0x4, offset = 0x4, fixed_abs, tag = 'smem constant byte address 0x4 - core index']
  #allocation1 [shape = 'u32[144,128]{1,0:T(1,128)}', space=vmem, size = 0x12000, scoped, tag = 'internal scratch']
  %s0 = inlined_call_operand.vmem [shape: f32[1,512], index: 0, kind: input, shape index: {}]
  %s1 = inlined_call_operand.vmem [shape: f32[1,512], index: 1, kind: input, shape index: {}]
  %s2 = inlined_call_operand.vmem [shape: f32[16,1], index: 2, kind: input, shape index: {}]
  %s3 = inlined_call_operand.hbm [shape: f32[16,512], index: 3, kind: output, shape index: {}]
  %s4 = sld [smem:[#allocation0]]
  $region45: #{tpu_custom_call.1} parent=0
    _
  %s6 = ssub.s32 1, %s4
  %s7 = scalar_select 0, %s6, %s4
  $region1: #{tpu_custom_call.1} parent=0
    #allocation2 [shape = 'u8[32768]{0}', space=vmem, size = 0x8000, scoped, tag = 'output window, operand 0']
    #allocation3 [shape = 's32[2]{0}', space=sflag, size = 0x8, scoped, tag = 'scoped memory for tpu_custom_call.1']
    %8 = vsyncpa [#allocation3], 0
    %s9 = scalar_lea.sflag [#allocation3], 1
    %10 = vsyncpa %s9, 0
    loop: start=0, step=1, limit=4
    $region2: #{tpu_custom_call.1} parent=1 // loop_pre_header
      _
    $region3: #{tpu_custom_call.1} parent=1 // loop_header
      %s12 = sphi 0, %s16
      %p13 = scmp.ge.s32.totalorder %s12, 4
      %s19 = sphi 0, %s31
      %s20 = sphi 0, %s27
      %s21 = sphi 0, %s19
      %s22 = sphi 0, %s20
      %s23 = sphi 0, %s21
      %s24 = sphi 0, %s22
      %s34 = sphi 0, %s36
      %s37 = sphi 0, %s34
      %s38 = sphi 0, %s37
      %s54 = sphi 0, %s38
      %s60 = sphi 0, %s62
      %s63 = sphi 0, %s60
      %s64 = sphi 0, %s63
      %s80 = sphi 0, %s64
      %s86 = sphi 0, %s88
      %s89 = sphi 0, %s86
      %s90 = sphi 0, %s89
      %s106 = sphi 0, %s90
      %s114 = sphi 0, %s116
      %s117 = sphi 0, %s114
      %s118 = sphi 0, %s117
      %s134 = sphi 0, %s118
    $region4: #{tpu_custom_call.1} parent=1 // loop_header_branch
      %15 = sbr.rel (%p13) target = $region8
    $region5: #{tpu_custom_call.1} parent=1 // loop_body
      %s17 = ssub.s32 %s12, 1
      %s18 = ssub.s32 %s12, 2
      %s25 = sadd.s32 1, %s20
      %p26 = scmp.ge.s32.totalorder %s25, 1
      %s27 = scalar_select %p26, 0, %s25
      %s28 = sadd.s32 1, %s19
      %s29 = scalar_select %p26, %s28, %s19
      %p30 = scmp.ge.s32.totalorder %s29, 2
      %s31 = scalar_select %p30, 0, %s29
      %s32 = ssub.s32 %s20, %s27
      %p33 = scmp.eq.s32.totalorder %s32, 0
      %s35 = sadd.s32 %s34, 1
      %s36 = scalar_select %p33, %s34, %s35
      %p39 = pneg %p33
      %p40 = scmp.eq.s32.totalorder %s12, 1
      %p41 = por %p39, %p40
      %p42 = scmp.ne.s32.totalorder %s34, %s37
      %p43 = scmp.eq.s32.totalorder %s12, 0
      %p44 = por %p42, %p43
      %p45 = scmp.ne.s32.totalorder %s34, %s37
      %p46 = scmp.eq.s32.totalorder %s17, 1
      %p47 = por %p45, %p46
      %p48 = scmp.ne.s32.totalorder %s37, %s38
      %p49 = scmp.eq.s32.totalorder %s17, 0
      %p50 = por %p48, %p49
      %p51 = scmp.ne.s32.totalorder %s37, %s38
      %p52 = scmp.eq.s32.totalorder %s18, 1
      %p53 = por %p51, %p52
      %p55 = scmp.ne.s32.totalorder %s38, %s54
      %p56 = scmp.eq.s32.totalorder %s18, 0
      %p57 = por %p55, %p56
      %s58 = ssub.s32 %s20, %s27
      %p59 = scmp.eq.s32.totalorder %s58, 0
      %s61 = sadd.s32 %s60, 1
      %s62 = scalar_select %p59, %s60, %s61
      %p65 = pneg %p59
      %p66 = scmp.eq.s32.totalorder %s12, 1
      %p67 = por %p65, %p66
      %p68 = scmp.ne.s32.totalorder %s60, %s63
      %p69 = scmp.eq.s32.totalorder %s12, 0
      %p70 = por %p68, %p69
      %p71 = scmp.ne.s32.totalorder %s60, %s63
      %p72 = scmp.eq.s32.totalorder %s17, 1
      %p73 = por %p71, %p72
      %p74 = scmp.ne.s32.totalorder %s63, %s64
      %p75 = scmp.eq.s32.totalorder %s17, 0
      %p76 = por %p74, %p75
      %p77 = scmp.ne.s32.totalorder %s63, %s64
      %p78 = scmp.eq.s32.totalorder %s18, 1
      %p79 = por %p77, %p78
      %p81 = scmp.ne.s32.totalorder %s64, %s80
      %p82 = scmp.eq.s32.totalorder %s18, 0
      %p83 = por %p81, %p82
      %s84 = ssub.s32 %s19, %s31
      %p85 = scmp.eq.s32.totalorder %s84, 0
      %s87 = sadd.s32 %s86, 1
      %s88 = scalar_select %p85, %s86, %s87
      %p91 = pneg %p85
      %p92 = scmp.eq.s32.totalorder %s12, 1
      %p93 = por %p91, %p92
      %p94 = scmp.ne.s32.totalorder %s86, %s89
      %p95 = scmp.eq.s32.totalorder %s12, 0
      %p96 = por %p94, %p95
      %p97 = scmp.ne.s32.totalorder %s86, %s89
      %p98 = scmp.eq.s32.totalorder %s17, 1
      %p99 = por %p97, %p98
      %p100 = scmp.ne.s32.totalorder %s89, %s90
      %p101 = scmp.eq.s32.totalorder %s17, 0
      %p102 = por %p100, %p101
      %p103 = scmp.ne.s32.totalorder %s89, %s90
      %p104 = scmp.eq.s32.totalorder %s18, 1
      %p105 = por %p103, %p104
      %p107 = scmp.ne.s32.totalorder %s90, %s106
      %p108 = scmp.eq.s32.totalorder %s18, 0
      %p109 = por %p107, %p108
      %s110 = ssub.s32 %s19, %s31
      %s111 = ssub.s32 %s20, %s27
      %s112 = sor.u32 %s110, %s111
      %p113 = scmp.eq.s32.totalorder %s112, 0
      %s115 = sadd.s32 %s114, 1
      %s116 = scalar_select %p113, %s114, %s115
      %p119 = pneg %p113
      %p120 = scmp.eq.s32.totalorder %s12, 1
      %p121 = por %p119, %p120
      %p122 = scmp.ne.s32.totalorder %s114, %s117
      %p123 = scmp.eq.s32.totalorder %s12, 0
      %p124 = por %p122, %p123
      %p125 = scmp.ne.s32.totalorder %s114, %s117
      %p126 = scmp.eq.s32.totalorder %s17, 1
      %p127 = por %p125, %p126
      %p128 = scmp.ne.s32.totalorder %s117, %s118
      %p129 = scmp.eq.s32.totalorder %s17, 0
      %p130 = por %p128, %p129
      %p131 = scmp.ne.s32.totalorder %s117, %s118
      %p132 = scmp.eq.s32.totalorder %s18, 1
      %p133 = por %p131, %p132
      %p135 = scmp.ne.s32.totalorder %s118, %s134
      %p136 = scmp.eq.s32.totalorder %s18, 0
      %p137 = por %p135, %p136
      %p138 = scmp.le.s32.totalorder 1, %s12
      %p139 = scmp.lt.s32.totalorder %s12, 3
      %p140 = pnand %p138, %p139
      %p141 = pneg %p140
      // Predicated region
      $region9: #{tpu_custom_call.1} parent=5 // pred_check
        _
      $region10: #{tpu_custom_call.1} parent=5 // pred_check_branch
        %143 = sbr.rel (%p140) target = $region12
      $region11: #{tpu_custom_call.1} parent=5 // pred_region
        %s144 = ssub.s32 %s12, 1
        // Predicated region
        $region13: #{tpu_custom_call.1} parent=11 // pred_check
          %p145 = pneg %p50
        $region14: #{tpu_custom_call.1} parent=11 // pred_check_branch
          %147 = sbr.rel (%p145) target = $region16
        $region15: #{tpu_custom_call.1} parent=11 // pred_region
          %s148 = smul.u32 4, %s22
          %p149 = scmp.lt.s32.totalorder %s148, 3
          %s150 = scalar_select %p149, %s148, 3
          %s151 = scalar_lea.vmem %s0, %s150
          %s152 = smul.u32 4, %s22
        $region16: #{tpu_custom_call.1} parent=11 // pred_fallthru
          _
        // Predicated region
        $region17: #{tpu_custom_call.1} parent=11 // pred_check
          %p153 = pneg %p76
        $region18: #{tpu_custom_call.1} parent=11 // pred_check_branch
          %155 = sbr.rel (%p153) target = $region20
        $region19: #{tpu_custom_call.1} parent=11 // pred_region
          %s156 = smul.u32 4, %s22
          %p157 = scmp.lt.s32.totalorder %s156, 3
          %s158 = scalar_select %p157, %s156, 3
          %s159 = scalar_lea.vmem %s1, %s158
          %s160 = smul.u32 4, %s22
        $region20: #{tpu_custom_call.1} parent=11 // pred_fallthru
          _
      $region12: #{tpu_custom_call.1} parent=5 // pred_fallthru
        _
      %p161 = scmp.lt.s32.totalorder %s12, 2
      // Predicated region
      $region21: #{tpu_custom_call.1} parent=5 // pred_check
        %p162 = pneg %p161
      $region22: #{tpu_custom_call.1} parent=5 // pred_check_branch
        %164 = sbr.rel (%p162) target = $region24
      $region23: #{tpu_custom_call.1} parent=5 // pred_region
        // Predicated region
        $region25: #{tpu_custom_call.1} parent=23 // pred_check
          %p165 = pneg %p96
        $region26: #{tpu_custom_call.1} parent=23 // pred_check_branch
          %167 = sbr.rel (%p165) target = $region28
        $region27: #{tpu_custom_call.1} parent=23 // pred_region
          %p168 = scmp.lt.s32.totalorder %s19, 1
          %s169 = scalar_select %p168, %s19, 1
          %s170 = smul.addr %s169, 8
          %s171 = scalar_lea.vmem %s2, %s170
        $region28: #{tpu_custom_call.1} parent=23 // pred_fallthru
          _
      $region24: #{tpu_custom_call.1} parent=5 // pred_fallthru
        _
      %p172 = scmp.le.s32.totalorder 1, %s12
      %p173 = scmp.lt.s32.totalorder %s12, 3
      %p174 = pnand %p172, %p173
      %p175 = pneg %p174
      // Predicated region
      $region29: #{tpu_custom_call.1} parent=5 // pred_check
        _
      $region30: #{tpu_custom_call.1} parent=5 // pred_check_branch
        %177 = sbr.rel (%p174) target = $region32
      $region31: #{tpu_custom_call.1} parent=5 // pred_region
        %s178 = ssub.s32 %s12, 1
        %s179 = smul.u32 4, %s22
        %p180 = scmp.lt.s32.totalorder %s179, 3
        %s181 = scalar_select %p180, %s179, 3
        %s182 = scalar_lea.vmem %s0, %s181
        %p183 = pneg %p50
        %p184 = pneg %p47
        %s185 = smul.u32 4, %s22
        %p186 = scmp.lt.s32.totalorder %s185, 3
        %s187 = scalar_select %p186, %s185, 3
        %s188 = scalar_lea.vmem %s1, %s187
        %p189 = pneg %p76
        %p190 = pneg %p73
        %p191 = scmp.lt.s32.totalorder %s21, 1
        %s192 = scalar_select %p191, %s21, 1
        %s193 = smul.addr %s192, 8
        %s194 = scalar_lea.vmem %s2, %s193
        %p195 = pneg %p102
        %p196 = pneg %p99
        %p197 = pneg %p130
        %p198 = pneg %p127
        %s199 = sand.u32 %s117, 1
        %s200 = scalar_lea.sflag [#allocation3], %s199
        %s201 = sand.u32 %s117, 1
        %s202 = smul.addr %s201, 32
        %s203 = scalar_lea.vmem [#allocation2], %s202
        %s204 = smul.u32 4, %s22
        %p205 = scmp.lt.s32.totalorder %s204, 3
        %s206 = scalar_select %p205, %s204, 3
        %s207 = scalar_lea.vmem %s0, %s206
        %s208 = smul.u32 4, %s22
        %s209 = smul.u32 4, %s22
        %p210 = scmp.lt.s32.totalorder %s209, 3
        %s211 = scalar_select %p210, %s209, 3
        %s212 = scalar_lea.vmem %s1, %s211
        %s213 = smul.u32 4, %s22
        %p214 = scmp.lt.s32.totalorder %s21, 1
        %s215 = scalar_select %p214, %s21, 1
        %s216 = smul.addr %s215, 8
        %s217 = scalar_lea.vmem %s2, %s216
        %s218 = smul.u32 4, %s22
        %v219 = vld [vmem:[%s207] sm:$0xf]
        %v220 = vld [vmem:[%s217] sm:$0xff]
        %v221 = vld [vmem:[%s212] sm:$0xf]
        %223 = vset.pattern.permute.xlu0 0
        %224 = vperm.xlu0 %223, %v220
        %v225 = vpop.permute.xlu0 %224
        %v228 = vlaneseq
        %v229 = vshrl.u32 %v228, 7
        %v230 = vsub.s32 0, %v229
        %v231 = vrot.slane %v221, %v230
        %v232 = vlaneseq
        %v233 = vshrl.u32 %v232, 7
        %v234 = vsub.s32 1, %v233
        %v235 = vrot.slane %v221, %v234
        %v236 = vlaneseq
        %v237 = vshrl.u32 %v236, 7
        %v238 = vsub.s32 2, %v237
        %v239 = vrot.slane %v221, %v238
        %v240 = vlaneseq
        %v241 = vshrl.u32 %v240, 7
        %v242 = vsub.s32 3, %v241
        %v243 = vrot.slane %v221, %v242
        %v248 = vmul.f32 %v225, %v231
        %v249 = vmul.f32 %v225, %v235
        %v250 = vmul.f32 %v225, %v239
        %v251 = vmul.f32 %v225, %v243
        %v253 = vlaneseq
        %v254 = vshrl.u32 %v253, 7
        %v255 = vsub.s32 0, %v254
        %v256 = vrot.slane %v219, %v255
        %v257 = vlaneseq
        %v258 = vshrl.u32 %v257, 7
        %v259 = vsub.s32 1, %v258
        %v260 = vrot.slane %v219, %v259
        %v261 = vlaneseq
        %v262 = vshrl.u32 %v261, 7
        %v263 = vsub.s32 2, %v262
        %v264 = vrot.slane %v219, %v263
        %v265 = vlaneseq
        %v266 = vshrl.u32 %v265, 7
        %v267 = vsub.s32 3, %v266
        %v268 = vrot.slane %v219, %v267
        %v273 = vadd.f32 %v256, %v248
        %v274 = vadd.f32 %v260, %v249
        %v275 = vadd.f32 %v264, %v250
        %v276 = vadd.f32 %v268, %v251
        %277 = vst [vmem:[%s203] sm:$0xff] %v273
        %278 = vst [vmem:[%s203 + $0x8] sm:$0xff] %v274
        %279 = vst [vmem:[%s203 + $0x10] sm:$0xff] %v275
        %280 = vst [vmem:[%s203 + $0x18] sm:$0xff] %v276
        %s281 = sand.u32 %s117, 1
        %s282 = scalar_lea.sflag [#allocation3], %s281
        %s283 = sand.u32 %s117, 1
        %s284 = smul.addr %s283, 32
        %s285 = scalar_lea.vmem [#allocation2], %s284
        // Predicated region
        $region33: #{tpu_custom_call.1} parent=31 // pred_check
          %p286 = pneg %p127
        $region34: #{tpu_custom_call.1} parent=31 // pred_check_branch
          %288 = sbr.rel (%p286) target = $region36
        $region35: #{tpu_custom_call.1} parent=31 // pred_region
          %s289 = smul.u32 4, %s22
          %s291 = ssub.s32 512, 512
          %292 = vsyncadd %s282, %s291
          %s293 = smul.addr %s21, 4
          %s294 = sadd.s32 %s289, %s293
          %s295 = smul.addr %s294, 128
          %s296 = scalar_lea.hbm %s3, %s295
          %s298 = sshll.u32 %s285, 4
          %s299 = int_to_ptr.vmem [resolvable:$true] %s298
          %301 = dma.vmem_to_hbm [thread:$0]  %s299, 512, %s296, %s282
        $region36: #{tpu_custom_call.1} parent=31 // pred_fallthru
          _
      $region32: #{tpu_custom_call.1} parent=5 // pred_fallthru
        _
      %p302 = scmp.le.s32.totalorder 2, %s12
      // Predicated region
      $region37: #{tpu_custom_call.1} parent=5 // pred_check
        %p303 = pneg %p302
      $region38: #{tpu_custom_call.1} parent=5 // pred_check_branch
        %305 = sbr.rel (%p303) target = $region40
      $region39: #{tpu_custom_call.1} parent=5 // pred_region
        %s306 = ssub.s32 %s12, 2
        // Predicated region
        $region41: #{tpu_custom_call.1} parent=39 // pred_check
          %p307 = pneg %p133
        $region42: #{tpu_custom_call.1} parent=39 // pred_check_branch
          %309 = sbr.rel (%p307) target = $region44
        $region43: #{tpu_custom_call.1} parent=39 // pred_region
          %s310 = sand.u32 %s118, 1
          %s311 = scalar_lea.sflag [#allocation3], %s310
          %s312 = sand.u32 %s118, 1
          %s313 = smul.addr %s312, 32
          %s314 = scalar_lea.vmem [#allocation2], %s313
          %315 = dma.done %s311, 512
        $region44: #{tpu_custom_call.1} parent=39 // pred_fallthru
          _
      $region40: #{tpu_custom_call.1} parent=5 // pred_fallthru
        _
    $region6: #{tpu_custom_call.1} parent=1 // loop_footer
      %s16 = sadd.s32 1, %s12
    $region7: #{tpu_custom_call.1} parent=1 // loop_footer_branch
      %11 = sbr.rel target = $region3
    $region8: #{tpu_custom_call.1} parent=1 // loop_exit
      _
    %316 = vsyncpa [#allocation3], 1
    %s317 = scalar_lea.sflag [#allocation3], 1
    %318 = vsyncpa %s317, 1

</llo_original>
